<compile_context>
chip_gen: v6e
topology: v6e:2x2x1
jax: 0.10.0
libtpu: 0.0.40
codegen_flags: <defaults>
</compile_context>

<pallas_src>
import functools

import jax
import jax.numpy as jnp
from jax import lax
from jax.experimental import pallas as pl
from jax.experimental.pallas import tpu as pltpu

_LANE = 128
# Per-row VMEM for the (bm,1) blocks: double-buffered i32 targets (lane-padded to
# 128) + the f32 accumulator (also lane-padded).
_TGT_ACC_BYTES_PER_ROW = 2 * _LANE * 4 + _LANE * 4


def _nll_kernel(tgt_ref, logp_ref, out_ref, acc_ref, *,
                ignore_index, n_rows, n_half, bv):
    """Grid = (n_cores, n_half, n_vb).

    axis 0: row-range half (parallel; size 1 on single-TC chips)
    axis 1: row block within the half (reduction)
    axis 2: vocab tile (reduction)

    tgt_ref : (bm, 1)   int32  target class index per row
    logp_ref: (bm, bv)  float  log-probability tile (any float dtype)
    out_ref : (1, 1, 1) f32    per-half partial (unnormalized) sum
    acc_ref : (bm, 1)   f32    running per-row accumulator scratch
    """
    c = pl.program_id(0)
    j = pl.program_id(1)
    v = pl.program_id(2)
    n_j = pl.num_programs(1)
    n_v = pl.num_programs(2)

    @pl.when((j == 0) & (v == 0))
    def _():
        acc_ref[...] = jnp.zeros_like(acc_ref)

    logp = logp_ref[...]                        # (bm, bv), input dtype
    tgt = tgt_ref[...]                          # (bm, 1)  i32
    bm = logp.shape[0]

    # Unclamped global block id / row ids. The index_map clamps the DMA source so
    # it never reads out of bounds; rows past n_rows (tail or duplicate clamped
    # block) are neutralized here by folding them into the target sentinel.
    gb = c * n_half + j
    row = lax.broadcasted_iota(jnp.int32, (bm, 1), 0)
    global_row = gb * bm + row                                  # (bm, 1)
    valid = (tgt != ignore_index) & (global_row < n_rows)       # (bm, 1)
    tgt_eff = jnp.where(valid, tgt, -1)                         # -1 never matches

    # Global column ids for this vocab tile; one-hot select in the input dtype.
    col = lax.broadcasted_iota(jnp.int32, logp.shape, 1) + v * bv
    sel = col == tgt_eff                                        # (bm, bv)

    # At most one nonzero per row => summing in the input dtype is bit-exact.
    zero = jnp.array(0, dtype=logp.dtype)
    picked = jnp.sum(jnp.where(sel, logp, zero), axis=1, keepdims=True)   # (bm, 1)
    acc_ref[...] = acc_ref[...] - picked.astype(jnp.float32)

    @pl.when((j == n_j - 1) & (v == n_v - 1))
    def _():
        total = jnp.sum(acc_ref[...], axis=0, keepdims=True)    # (1, 1)
        out_ref[...] = jnp.reshape(total, (1, 1, 1))


def _chip_config():
    """(num_tensorcores, vmem tile budget, scoped vmem limit) per TPU generation."""
    kind = ""
    try:
        kind = jax.devices()[0].device_kind.lower()
    except Exception:
        pass
    if "v7" in kind:
        # v7x: 2 TCs/chip, only 64 MiB VMEM per TC.
        # TODO(synk): verify with xprof that the "parallel" axis shards across both
        # TCs; if not, switch that axis to pltpu.CORE_PARALLEL.
        return 2, 20 * 1024 * 1024, 48 * 1024 * 1024
    # v5e / v6e: single TC, 128 MiB physical VMEM (default scoped limit is lower).
    return 1, 28 * 1024 * 1024, 64 * 1024 * 1024


def _choose_tiles(n_rows, vocab, itemsize, budget_bytes):
    """Pick (bm, bv): row-block and vocab-tile sizes fitting the VMEM budget.

    Accounts for the double-buffered (bm, bv) log-prob block plus the
    lane-padded (bm, 1) target / accumulator blocks.
    """
    per_row_full = 2 * vocab * itemsize + _TGT_ACC_BYTES_PER_ROW
    bm_full = budget_bytes // per_row_full

    if n_rows <= bm_full:
        # Single full-dim row block, no vocab tiling.
        return int(n_rows), int(vocab)
    if bm_full >= 32:
        # Full vocab per block, many-row blocks (multiple of 32 for packed dtypes).
        bm = min(int(bm_full) // 32 * 32, 8192)
        return bm, int(vocab)

    # Huge vocab: tile V, keep a small row block.
    if n_rows >= 32:
        bm = 32
    else:
        bm = int(n_rows)                       # full-dim row block is always legal
    avail = budget_bytes - bm * _TGT_ACC_BYTES_PER_ROW
    bv = max(_LANE, (avail // (2 * bm * itemsize)) // _LANE * _LANE)
    bv = min(int(bv), int(vocab))
    return bm, bv


def nll_loss(out, tar, ignore_index):
    """out: (T_out, B, V) log-probs, tar: (T, B) int targets, T <= T_out."""
    T, B = tar.shape
    output = out[:T]                            # out[:tar.size(0)]
    V = output.shape[-1]
    normalize = T * output.shape[1]             # output.size(0) * output.size(1)

    n_rows = T * B
    logp = output.reshape(n_rows, V)            # no pad, no dtype copy (cast in-kernel)
    tgt = tar.reshape(n_rows, 1).astype(jnp.int32)

    n_cores, budget, vmem_limit = _chip_config()
    bm, bv = _choose_tiles(n_rows, V, logp.dtype.itemsize, budget)

    n_blocks = int(pl.cdiv(n_rows, bm))
    n_half = int(pl.cdiv(n_blocks, n_cores))
    n_vb = int(pl.cdiv(V, bv))
    last_block = n_blocks - 1

    def block_idx(c, j):
        # Clamp so the DMA never starts past the array; the clamped duplicate block
        # (only possible on the v7x 2-way split) is fully masked in-kernel via the
        # global_row >= n_rows check folded into tgt_eff.
        return jnp.minimum(c * n_half + j, last_block)

    kernel = functools.partial(
        _nll_kernel,
        ignore_index=int(ignore_index),
        n_rows=n_rows,
        n_half=n_half,
        bv=bv,
    )

    partials = pl.pallas_call(
        kernel,
        out_shape=jax.ShapeDtypeStruct((n_cores, 1, 1), jnp.float32),
        grid_spec=pltpu.PrefetchScalarGridSpec(
            num_scalar_prefetch=0,
            grid=(n_cores, n_half, n_vb),
            in_specs=[
                pl.BlockSpec((bm, 1), lambda c, j, v: (block_idx(c, j), 0)),   # targets
                pl.BlockSpec((bm, bv), lambda c, j, v: (block_idx(c, j), v)),  # log-probs
            ],
            out_specs=pl.BlockSpec((1, 1, 1), lambda c, j, v: (c, 0, 0)),
            scratch_shapes=[pltpu.VMEM((bm, 1), jnp.float32)],
        ),
        compiler_params=pltpu.CompilerParams(
            dimension_semantics=("parallel", "arbitrary", "arbitrary"),
            vmem_limit_bytes=vmem_limit,
        ),
    )(tgt, logp)

    return jnp.sum(partials) / jnp.float32(normalize)


if __name__ == "__main__":
    key = jax.random.PRNGKey(0)
    k1, k2 = jax.random.split(key)

    # small shapes: seq T=8, batch B=2, vocab V=128; `out` has a couple extra
    # leading steps to exercise the out[:tar.size(0)] slice.
    T, B, V = 8, 2, 128
    ignore_index = 0

    logits = jax.random.normal(k1, (T + 2, B, V), dtype=jnp.float32)
    out = jax.nn.log_softmax(logits, axis=-1)          # NLLLoss expects log-probs
    tar = jax.random.randint(k2, (T, B), 0, V, dtype=jnp.int32)
    # sprinkle some ignore_index entries
    tar = tar.at[0, 0].set(ignore_index).at[3, 1].set(ignore_index)

    loss = nll_loss(out, tar, ignore_index)
    jax.block_until_ready(loss)

    # reference (plain JAX) sanity check
    logp2 = out[:T].reshape(T * B, V)
    tgt2 = tar.reshape(-1)
    picked = jnp.take_along_axis(logp2, tgt2[:, None], axis=1)[:, 0]
    ref = jnp.sum(jnp.where(tgt2 != ignore_index, -picked, 0.0)) / (T * B)
    assert jnp.allclose(loss, ref, rtol=1e-5, atol=1e-5), (loss, ref)

    print("KERNEL_OK")
</pallas_src>

<mosaic_0001>
module attributes {stable_mosaic.version = 11 : i64} {
  func.func @_nll_kernel(%arg0: i32, %arg1: i32, %arg2: i32, %arg3: memref<16x1xi32, #tpu.memory_space<vmem>>, %arg4: memref<16x128xf32, #tpu.memory_space<vmem>>, %arg5: memref<1x1x1xf32, #tpu.memory_space<vmem>>, %arg6: memref<16x1xf32, #tpu.memory_space<vmem>>) attributes {dimension_semantics = [#tpu.dimension_semantics<parallel>, #tpu.dimension_semantics<arbitrary>, #tpu.dimension_semantics<arbitrary>], iteration_bounds = array<i64: 1, 1, 1>, scalar_prefetch = 0 : i64, scratch_operands = 1 : i64, tpu.core_type = #tpu.core_type<tc>, window_params = [{transform_indices = @transform_0, window_bounds = array<i64: 16, 1>}, {transform_indices = @transform_1, window_bounds = array<i64: 16, 128>}, {transform_indices = @transform_2, window_bounds = array<i64: 1, 1, 1>}]} {
    %c0_i32 = arith.constant 0 : i32
    %0 = arith.cmpi eq, %arg1, %c0_i32 : i32
    %c0_i32_0 = arith.constant 0 : i32
    %1 = arith.cmpi eq, %arg2, %c0_i32_0 : i32
    %2 = arith.andi %0, %1 : i1
    %3 = arith.extui %2 : i1 to i32
    %c0_i32_1 = arith.constant 0 : i32
    %4 = arith.cmpi ne, %3, %c0_i32_1 : i32
    scf.if %4 {
      %cst_15 = arith.constant 0.000000e+00 : f32
      %38 = vector.broadcast %cst_15 : f32 to vector<16x1xf32>
      %c0_16 = arith.constant 0 : index
      %c0_17 = arith.constant 0 : index
      %39 = vector.load %arg6[%c0_16, %c0_17] : memref<16x1xf32, #tpu.memory_space<vmem>>, vector<16x1xf32>
      tpu.vector_store %arg6[%c0_16, %c0_17], %38 {strides = array<i32>} : memref<16x1xf32, #tpu.memory_space<vmem>>, vector<16x1xf32>,
    } else {
    }
    %c0 = arith.constant 0 : index
    %c0_2 = arith.constant 0 : index
    %5 = vector.load %arg4[%c0, %c0_2] : memref<16x128xf32, #tpu.memory_space<vmem>>, vector<16x128xf32>
    %c0_3 = arith.constant 0 : index
    %c0_4 = arith.constant 0 : index
    %6 = vector.load %arg3[%c0_3, %c0_4] : memref<16x1xi32, #tpu.memory_space<vmem>>, vector<16x1xi32>
    %c1_i32 = arith.constant 1 : i32
    %7 = arith.muli %arg0, %c1_i32 : i32
    %8 = arith.addi %7, %arg1 : i32
    %9 = tpu.iota {dimensions = array<i32: 0>} : vector<16x1xi32>
    %c16_i32 = arith.constant 16 : i32
    %10 = arith.muli %8, %c16_i32 : i32
    %11 = vector.broadcast %10 : i32 to vector<16x1xi32>
    %12 = arith.addi %11, %9 : vector<16x1xi32>
    %c0_i32_5 = arith.constant 0 : i32
    %13 = vector.broadcast %c0_i32_5 : i32 to vector<16x1xi32>
    %14 = arith.cmpi ne, %6, %13 : vector<16x1xi32>
    %c16_i32_6 = arith.constant 16 : i32
    %15 = vector.broadcast %c16_i32_6 : i32 to vector<16x1xi32>
    %16 = arith.cmpi slt, %12, %15 : vector<16x1xi32>
    %17 = arith.andi %14, %16 : vector<16x1xi1>
    %c-1_i32 = arith.constant -1 : i32
    %18 = vector.broadcast %c-1_i32 : i32 to vector<16x1xi32>
    %19 = arith.select %17, %6, %18 : vector<16x1xi1>, vector<16x1xi32>
    %20 = tpu.iota {dimensions = array<i32: 1>} : vector<16x128xi32>
    %c128_i32 = arith.constant 128 : i32
    %21 = arith.muli %arg2, %c128_i32 : i32
    %22 = vector.broadcast %21 : i32 to vector<16x128xi32>
    %23 = arith.addi %20, %22 : vector<16x128xi32>
    %24 = vector.broadcast %19 : vector<16x1xi32> to vector<16x128xi32>
    %25 = arith.cmpi eq, %23, %24 : vector<16x128xi32>
    %cst = arith.constant 0.000000e+00 : f32
    %26 = vector.broadcast %cst : f32 to vector<16x128xf32>
    %27 = arith.select %25, %5, %26 : vector<16x128xi1>, vector<16x128xf32>
    %cst_7 = arith.constant dense<0.000000e+00> : vector<16xf32>
    %28 = vector.multi_reduction <add>, %27, %cst_7 [1] : vector<16x128xf32> to vector<16xf32>
    %29 = vector.shape_cast %28 : vector<16xf32> to vector<16x1xf32>
    %c0_8 = arith.constant 0 : index
    %c0_9 = arith.constant 0 : index
    %30 = vector.load %arg6[%c0_8, %c0_9] : memref<16x1xf32, #tpu.memory_space<vmem>>, vector<16x1xf32>
    %31 = arith.subf %30, %29 : vector<16x1xf32>
    %c0_10 = arith.constant 0 : index
    %c0_11 = arith.constant 0 : index
    %32 = vector.load %arg6[%c0_10, %c0_11] : memref<16x1xf32, #tpu.memory_space<vmem>>, vector<16x1xf32>
    tpu.vector_store %arg6[%c0_10, %c0_11], %31 {strides = array<i32>} : memref<16x1xf32, #tpu.memory_space<vmem>>, vector<16x1xf32>,
    %c0_i32_12 = arith.constant 0 : i32
    %33 = arith.cmpi eq, %arg1, %c0_i32_12 : i32
    %c0_i32_13 = arith.constant 0 : i32
    %34 = arith.cmpi eq, %arg2, %c0_i32_13 : i32
    %35 = arith.andi %33, %34 : i1
    %36 = arith.extui %35 : i1 to i32
    %c0_i32_14 = arith.constant 0 : i32
    %37 = arith.cmpi ne, %36, %c0_i32_14 : i32
    scf.if %37 {
      %c0_15 = arith.constant 0 : index
      %c0_16 = arith.constant 0 : index
      %38 = vector.load %arg6[%c0_15, %c0_16] : memref<16x1xf32, #tpu.memory_space<vmem>>, vector<16x1xf32>
      %cst_17 = arith.constant dense<0.000000e+00> : vector<1xf32>
      %39 = vector.multi_reduction <add>, %38, %cst_17 [0] : vector<16x1xf32> to vector<1xf32>
      %40 = vector.shape_cast %39 : vector<1xf32> to vector<1x1xf32>
      %41 = vector.shape_cast %40 : vector<1x1xf32> to vector<1x1x1xf32>
      %c0_18 = arith.constant 0 : index
      %c0_19 = arith.constant 0 : index
      %c0_20 = arith.constant 0 : index
      %42 = vector.load %arg5[%c0_18, %c0_19, %c0_20] : memref<1x1x1xf32, #tpu.memory_space<vmem>>, vector<1x1x1xf32>
      tpu.vector_store %arg5[%c0_18, %c0_19, %c0_20], %41 {strides = array<i32>} : memref<1x1x1xf32, #tpu.memory_space<vmem>>, vector<1x1x1xf32>,
    } else {
    }
    return
  }
  func.func @transform_0(%arg0: i32, %arg1: i32, %arg2: i32) -> (i32, i32) {
    %c1_i32 = arith.constant 1 : i32
    %0 = arith.muli %arg0, %c1_i32 : i32
    %1 = arith.addi %0, %arg1 : i32
    %c0_i32 = arith.constant 0 : i32
    %2 = arith.minsi %1, %c0_i32 : i32
    %c0_i32_0 = arith.constant 0 : i32
    %c0_i32_1 = arith.constant 0 : i32
    return %2, %c0_i32_0 : i32, i32
  }
  func.func @transform_1(%arg0: i32, %arg1: i32, %arg2: i32) -> (i32, i32) {
    %c1_i32 = arith.constant 1 : i32
    %0 = arith.muli %arg0, %c1_i32 : i32
    %1 = arith.addi %0, %arg1 : i32
    %c0_i32 = arith.constant 0 : i32
    %2 = arith.minsi %1, %c0_i32 : i32
    %c0_i32_0 = arith.constant 0 : i32
    return %2, %arg2 : i32, i32
  }
  func.func @transform_2(%arg0: i32, %arg1: i32, %arg2: i32) -> (i32, i32, i32) {
    %c0_i32 = arith.constant 0 : i32
    %c0_i32_0 = arith.constant 0 : i32
    %c0_i32_1 = arith.constant 0 : i32
    return %arg0, %c0_i32, %c0_i32_0 : i32, i32, i32
  }
}

</mosaic_0001>

<llo_original>
// kernel: tpu_custom_call.1
$region0: #{tpu_custom_call.1}
  #allocation0 [shape = 'u32[]', space=smem, size = 0x4, offset = 0x4, fixed_abs, tag = 'smem constant byte address 0x4 - core index']
  #allocation1 [shape = 'u32[144,128]{1,0:T(1,128)}', space=vmem, size = 0x12000, scoped, tag = 'internal scratch']
  #allocation2 [shape = 'f32[16,1]{1,0:T(8,128)}', space=vmem, size = 0x2000, scoped, tag = 'scratch operand']
  %s0 = inlined_call_operand.vmem [shape: s32[16,1], index: 0, kind: input, shape index: {}]
  %s1 = inlined_call_operand.vmem [shape: f32[16,128], index: 1, kind: input, shape index: {}]
  %s2 = inlined_call_operand.hbm [shape: f32[1,1,1], index: 2, kind: output, shape index: {}]
  %s3 = sld [smem:[#allocation0]]
  $region26: #{tpu_custom_call.1} parent=0
    _
  %s5 = ssub.s32 1, %s3
  %s6 = scalar_select 0, %s5, %s3
  $region1: #{tpu_custom_call.1} parent=0
    #allocation3 [shape = 'u8[512]{0}', space=vmem, size = 0x400, scoped, tag = 'output window, operand 0, single buffered']
    #allocation4 [shape = 's32[1]{0}', space=sflag, size = 0x4, scoped, tag = 'scoped memory for tpu_custom_call.1']
    %7 = vsyncpa [#allocation4], 0
    // Predicated region
    $region2: #{tpu_custom_call.1} parent=1 // pred_check
      _
    $region3: #{tpu_custom_call.1} parent=1 // pred_check_branch
      %9 = sbr.rel (0) target = $region5
    $region4: #{tpu_custom_call.1} parent=1 // pred_region
      %s10 = sadd.s32 0, 0
      %p11 = scmp.lt.s32.totalorder %s10, 0
      %s12 = scalar_select %p11, %s10, 0
      %s13 = smul.u32 2, %s12
      %p14 = scmp.lt.s32.totalorder %s13, 1
      %s15 = scalar_select %p14, %s13, 1
      %s16 = smul.addr %s15, 8
      %s17 = scalar_lea.vmem %s0, %s16
      %s18 = sadd.s32 0, 0
      %p19 = scmp.lt.s32.totalorder %s18, 0
      %s20 = scalar_select %p19, %s18, 0
      %s21 = smul.u32 2, %s20
    $region5: #{tpu_custom_call.1} parent=1 // pred_fallthru
      _
    // Predicated region
    $region6: #{tpu_custom_call.1} parent=1 // pred_check
      _
    $region7: #{tpu_custom_call.1} parent=1 // pred_check_branch
      %23 = sbr.rel (0) target = $region9
    $region8: #{tpu_custom_call.1} parent=1 // pred_region
      %s24 = sadd.s32 0, 0
      %p25 = scmp.lt.s32.totalorder %s24, 0
      %s26 = scalar_select %p25, %s24, 0
      %s27 = smul.u32 2, %s26
      %p28 = scmp.lt.s32.totalorder %s27, 1
      %s29 = scalar_select %p28, %s27, 1
      %s30 = smul.addr %s29, 8
      %s31 = scalar_lea.vmem %s1, %s30
      %s32 = sadd.s32 0, 0
      %p33 = scmp.lt.s32.totalorder %s32, 0
      %s34 = scalar_select %p33, %s32, 0
      %s35 = smul.u32 2, %s34
    $region9: #{tpu_custom_call.1} parent=1 // pred_fallthru
      _
    %s36 = sadd.s32 0, 0
    %p37 = scmp.lt.s32.totalorder %s36, 0
    %s38 = scalar_select %p37, %s36, 0
    %s39 = smul.u32 2, %s38
    %p40 = scmp.lt.s32.totalorder %s39, 1
    %s41 = scalar_select %p40, %s39, 1
    %s42 = smul.addr %s41, 8
    %s43 = scalar_lea.vmem %s0, %s42
    %s44 = sadd.s32 0, 0
    %p45 = scmp.lt.s32.totalorder %s44, 0
    %s46 = scalar_select %p45, %s44, 0
    %s47 = smul.u32 2, %s46
    %p48 = scmp.lt.s32.totalorder %s47, 1
    %s49 = scalar_select %p48, %s47, 1
    %s50 = smul.addr %s49, 8
    %s51 = scalar_lea.vmem %s1, %s50
    %s52 = sadd.s32 0, 0
    %p53 = scmp.lt.s32.totalorder %s52, 0
    %s54 = scalar_select %p53, %s52, 0
    %s55 = smul.u32 2, %s54
    %p56 = scmp.lt.s32.totalorder %s55, 1
    %s57 = scalar_select %p56, %s55, 1
    %s58 = smul.addr %s57, 8
    %s59 = scalar_lea.vmem %s0, %s58
    %s60 = sadd.s32 0, 0
    %p61 = scmp.lt.s32.totalorder %s60, 0
    %s62 = scalar_select %p61, %s60, 0
    %s63 = smul.u32 2, %s62
    %s64 = sadd.s32 0, 0
    %p65 = scmp.lt.s32.totalorder %s64, 0
    %s66 = scalar_select %p65, %s64, 0
    %s67 = smul.u32 2, %s66
    %p68 = scmp.lt.s32.totalorder %s67, 1
    %s69 = scalar_select %p68, %s67, 1
    %s70 = smul.addr %s69, 8
    %s71 = scalar_lea.vmem %s1, %s70
    %s72 = sadd.s32 0, 0
    %p73 = scmp.lt.s32.totalorder %s72, 0
    %s74 = scalar_select %p73, %s72, 0
    %s75 = smul.u32 2, %s74
    %p76 = scmp.eq.s32.totalorder 0, 0
    %p77 = scmp.eq.s32.totalorder 0, 0
    %p78 = pnand %p76, %p77
    %p79 = pneg %p78
    // Predicated region
    $region10: #{tpu_custom_call.1} parent=1 // pred_check
      _
    $region11: #{tpu_custom_call.1} parent=1 // pred_check_branch
      %81 = sbr.rel (%p78) target = $region13
    $region12: #{tpu_custom_call.1} parent=1 // pred_region
      %vm82 = vcmask 7168
      %83 = vst.msk [vmem:[#allocation2] sm:$0xff] %vm82, 0.0
      %84 = vst.msk [vmem:[#allocation2 + $0x8] sm:$0xff] %vm82, 0.0
    $region13: #{tpu_custom_call.1} parent=1 // pred_fallthru
      _
    %v85 = vld [vmem:[%s71] sm:$0xff]
    %v86 = vld [vmem:[%s71 + $0x8] sm:$0xff]
    %v87 = vld [vmem:[%s59] sm:$0xff]
    %v88 = vld [vmem:[%s59 + $0x8] sm:$0xff]
    %s89 = sadd.s32 0, 0
    %v90 = vlaneseq
    %v91 = vshrl.u32 %v90, 7
    %v92 = vadd.s32 %v91, 8
    %s93 = smul.u32 %s89, 16
    %v94 = vstv %s93
    %v95 = vadd.s32 %v94, %v91
    %v96 = vadd.s32 %v94, %v92
    %vm97 = vcmp.ne.s32.totalorder %v87, 0
    %vm98 = vcmp.ne.s32.totalorder %v88, 0
    %vm99 = vcmp.lt.s32.totalorder %v95, 16
    %vm100 = vcmp.lt.s32.totalorder %v96, 16
    %vm101 = vmand %vm97, %vm99
    %vm102 = vmand %vm98, %vm100
    %v103 = vsel %vm101, %v87, 4294967295
    %v104 = vsel %vm102, %v88, 4294967295
    %v105 = vlaneseq
    %v106 = vand.u32 %v105, 127
    %s107 = smul.u32 0, 128
    %v108 = vstv %s107
    %v109 = vadd.s32 %v106, %v108
    %110 = vset.pattern.permute.xlu0 0
    %111 = vperm.xlu0 %110, %v103
    %v112 = vpop.permute.xlu0 %111
    %113 = vset.pattern.permute.xlu0 0
    %114 = vperm.xlu0 %113, %v104
    %v115 = vpop.permute.xlu0 %114
    %vm116 = vcmp.eq.s32.totalorder %v109, %v112
    %vm117 = vcmp.eq.s32.totalorder %v109, %v115
    %v118 = vsel %vm116, %v85, 0.0
    %v119 = vsel %vm117, %v86, 0.0
    %120 = vadd.xlane.f32.xlu0 %v118
    %v121 = vpop.xlane.xlu0 %120
    %122 = vadd.xlane.f32.xlu0 %v119
    %v123 = vpop.xlane.xlu0 %122
    %v124 = vld [vmem:[#allocation2] sm:$0xff]
    %v125 = vld [vmem:[#allocation2 + $0x8] sm:$0xff]
    %v126 = vsub.f32 %v124, %v121
    %v127 = vsub.f32 %v125, %v123
    %vm128 = vcmask 7168
    %129 = vst.msk [vmem:[#allocation2] sm:$0xff] %vm128, %v126
    %130 = vst.msk [vmem:[#allocation2 + $0x8] sm:$0xff] %vm128, %v127
    // Predicated region
    $region14: #{tpu_custom_call.1} parent=1 // pred_check
      _
    $region15: #{tpu_custom_call.1} parent=1 // pred_check_branch
      %132 = sbr.rel (%p78) target = $region17
    $region16: #{tpu_custom_call.1} parent=1 // pred_region
      %v133 = vld [vmem:[#allocation2] sm:$0xff]
      %v134 = vld [vmem:[#allocation2 + $0x8] sm:$0xff]
      %v135 = vsel %vm128, %v133, 0.0
      %v136 = vsel %vm128, %v134, 0.0
      %v137 = vadd.f32 %v135, %v136
      %v138 = vrot.slane %v137, 4
      %v139 = vadd.f32 %v137, %v138
      %v140 = vrot.slane %v139, 2
      %v141 = vadd.f32 %v139, %v140
      %v142 = vrot.slane %v141, 1
      %v143 = vadd.f32 %v141, %v142
      %vm144 = vcmask 0
      %145 = vst.msk [vmem:[#allocation3] sm:$0x1] %vm144, %v143
    $region17: #{tpu_custom_call.1} parent=1 // pred_fallthru
      _
    // Predicated region
    $region18: #{tpu_custom_call.1} parent=1 // pred_check
      _
    $region19: #{tpu_custom_call.1} parent=1 // pred_check_branch
      %147 = sbr.rel (0) target = $region21
    $region20: #{tpu_custom_call.1} parent=1 // pred_region
      %s149 = ssub.s32 16, 16
      %150 = vsyncadd [#allocation4], %s149
      %s152 = sshll.u32 [#allocation3], 4
      %s153 = int_to_ptr.vmem [resolvable:$true] %s152
      %155 = dma.vmem_to_hbm [thread:$0]  %s153, 16, %s2, [#allocation4]
    $region21: #{tpu_custom_call.1} parent=1 // pred_fallthru
      _
    // Predicated region
    $region22: #{tpu_custom_call.1} parent=1 // pred_check
      _
    $region23: #{tpu_custom_call.1} parent=1 // pred_check_branch
      %157 = sbr.rel (0) target = $region25
    $region24: #{tpu_custom_call.1} parent=1 // pred_region
      %158 = dma.done [#allocation4], 16
    $region25: #{tpu_custom_call.1} parent=1 // pred_fallthru
      _
    %159 = vsyncpa [#allocation4], 1

</llo_original>
